<compile_context>
chip_gen: v6e
topology: v6e:2x2x1
jax: 0.10.0
libtpu: 0.0.40
codegen_flags: <defaults>
</compile_context>

<pallas_src>
import functools

import jax
import jax.numpy as jnp
from jax import lax
from jax.experimental import pallas as pl
from jax.experimental.pallas import tpu as pltpu


def _round_up(x, m):
    return ((x + m - 1) // m) * m


def _choose_block_b(B):
    """Pick the batch tile.

    Small/medium batches: one full block (full-array dims are always legal).
    Large batches: tiles that are multiples of 256 (lane-dense stores, since
    batch sits on the lane axis of every activation), capped at 8192 rows,
    with an EVEN number of blocks so v7x's two TensorCores get equal work.
    """
    if B <= 1024:
        return B
    max_tile = 8192
    num_blocks = max(2, 2 * pl.cdiv(B, 2 * max_tile))   # even, >= 2
    return _round_up(pl.cdiv(B, num_blocks), 256)


def _mlp_kernel(x_ref,
                w1_ref, b1_ref,
                w2_ref, b2_ref,
                w3_ref, b3_ref,
                w4_ref, b4_ref,
                o_ref):
    """Fused 4-layer MLP with ReLU (clamp(min=0)) between layers.

    Computed fully transposed: every activation is (H_k, block_b) so the batch
    lives on the lane axis (lane-dense VPU work, unmasked lane-dense stores).
    MXU operands are cast to the weights' dtype; accumulation and all
    elementwise math (bias add, ReLU) are f32.
    """
    cd = w1_ref.dtype                       # compute dtype for MXU operands
    x = x_ref[...].astype(cd)               # (block_b, D_in), cast in-kernel

    # Layer 1: (H1, block_b) = w1^T @ x^T   (contract w1 dim0 with x dim1).
    h = lax.dot_general(w1_ref[...], x,
                        dimension_numbers=(((0,), (1,)), ((), ())),
                        preferred_element_type=jnp.float32)
    h = jnp.maximum(h + b1_ref[...], 0.0)   # bias (H1, 1) broadcasts over lanes

    # Layer 2: (H2, block_b) = w2^T @ h     (contract w2 dim0 with h dim0).
    h = lax.dot_general(w2_ref[...], h.astype(cd),
                        dimension_numbers=(((0,), (0,)), ((), ())),
                        preferred_element_type=jnp.float32)
    h = jnp.maximum(h + b2_ref[...], 0.0)

    # Layer 3: (H3, block_b)
    h = lax.dot_general(w3_ref[...], h.astype(cd),
                        dimension_numbers=(((0,), (0,)), ((), ())),
                        preferred_element_type=jnp.float32)
    h = jnp.maximum(h + b3_ref[...], 0.0)

    # Layer 4 (no ReLU): (D_out, block_b)
    out = lax.dot_general(w4_ref[...], h.astype(cd),
                          dimension_numbers=(((0,), (0,)), ((), ())),
                          preferred_element_type=jnp.float32)
    o_ref[...] = (out + b4_ref[...]).astype(o_ref.dtype)


@functools.partial(jax.jit, static_argnames=("compute_dtype", "block_b"))
def house_price_predictor(x, params, *, compute_dtype=jnp.bfloat16,
                          block_b=None):
    """x: (B, D_in) f32.  params: w1..w4 as (D_in, D_out)-style matrices
    (transposed w.r.t. nn.Linear's weight), b1..b4 as (1, D_out).
    Returns (B, D_out) f32."""
    B, D_in = x.shape
    D_out = params["w4"].shape[1]
    H1 = params["w1"].shape[1]
    H2 = params["w2"].shape[1]
    H3 = params["w3"].shape[1]

    if block_b is None:
        block_b = _choose_block_b(B)
    num_blocks = pl.cdiv(B, block_b)

    # Weights cast to the compute dtype in the wrapper (they are tiny, ~8.6K
    # params); biases stay f32 and are pre-shaped (H, 1) so they broadcast
    # over the lane (batch) axis inside the kernel with no in-kernel transpose.
    flat_params = []
    for i in range(1, 5):
        flat_params.append(params[f"w{i}"].astype(compute_dtype))
        flat_params.append(
            jnp.transpose(params[f"b{i}"]).astype(jnp.float32))  # (H, 1)

    def x_map(i):
        return (i, 0)

    def out_map(i):
        return (0, i)

    def rep_map(i):
        return (0, 0)

    # Weights/biases are tiny and block-invariant: constant index_map keeps
    # them resident in VMEM across the whole grid (no re-DMA per step).
    w_specs = [pl.BlockSpec(p.shape, rep_map) for p in flat_params]

    # Working set: double-buffered x/out tiles (x is f32 in HBM, cast in the
    # kernel) + resident weights; capped at 16 MiB (v5e scoped default).
    x_itemsize = jnp.dtype(x.dtype).itemsize
    tile_bytes = 2 * block_b * (D_in * x_itemsize + D_out * 4)
    w_bytes = sum(int(p.size) * p.dtype.itemsize for p in flat_params)
    vmem_limit = min(16 * 1024 * 1024,
                     max(2 * 1024 * 1024, 4 * (tile_bytes + w_bytes)))

    flops = 2 * B * (D_in * H1 + H1 * H2 + H2 * H3 + H3 * D_out)
    bytes_accessed = (B * D_in * x_itemsize + B * D_out * 4
                      + sum(int(p.size) * p.dtype.itemsize for p in flat_params))

    out_t = pl.pallas_call(
        _mlp_kernel,
        out_shape=jax.ShapeDtypeStruct((D_out, B), jnp.float32),
        grid_spec=pltpu.PrefetchScalarGridSpec(
            num_scalar_prefetch=0,
            grid=(num_blocks,),
            in_specs=[pl.BlockSpec((block_b, D_in), x_map)] + w_specs,
            out_specs=pl.BlockSpec((D_out, block_b), out_map),
        ),
        compiler_params=pltpu.CompilerParams(
            dimension_semantics=("parallel",),
            vmem_limit_bytes=int(vmem_limit)),
        cost_estimate=pl.CostEstimate(flops=flops, transcendentals=0,
                                      bytes_accessed=bytes_accessed),
    )(x, *flat_params)

    # (D_out, B) -> (B, D_out); for D_out == 1 this is just a reshape.
    return jnp.transpose(out_t)


def init_params(key, D_in, H1, H2, H3, D_out):
    """Deterministic synthetic parameters (uniform, nn.Linear-style fan-in scaling)."""
    dims = [(D_in, H1), (H1, H2), (H2, H3), (H3, D_out)]
    params = {}
    for i, (fi, fo) in enumerate(dims, start=1):
        key, kw, kb = jax.random.split(key, 3)
        bound = 1.0 / jnp.sqrt(jnp.float32(fi))
        params[f"w{i}"] = jax.random.uniform(
            kw, (fi, fo), jnp.float32, minval=-bound, maxval=bound)
        params[f"b{i}"] = jax.random.uniform(
            kb, (1, fo), jnp.float32, minval=-bound, maxval=bound)
    return params


def reference_forward(x, params):
    h = jnp.maximum(x @ params["w1"] + params["b1"], 0.0)
    h = jnp.maximum(h @ params["w2"] + params["b2"], 0.0)
    h = jnp.maximum(h @ params["w3"] + params["b3"], 0.0)
    return h @ params["w4"] + params["b4"]


if __name__ == "__main__":
    # Small shapes consistent with the module's forward: (B, D_in) -> (B, D_out)
    B, D_in, H1, H2, H3, D_out = 8, 32, 64, 64, 32, 1

    key = jax.random.PRNGKey(0)
    key, kx = jax.random.split(key)
    x = jax.random.normal(kx, (B, D_in), jnp.float32)
    params = init_params(key, D_in, H1, H2, H3, D_out)

    # Exact f32 path (validation only): must match the reference tightly.
    y32 = jax.block_until_ready(
        house_price_predictor(x, params, compute_dtype=jnp.float32))
    y_ref = reference_forward(x, params)
    assert y32.shape == (B, D_out), y32.shape
    assert jnp.allclose(y32, y_ref, atol=1e-4, rtol=1e-4), \
        f"f32 max abs err = {jnp.max(jnp.abs(y32 - y_ref))}"

    # Default bf16 fast path (halves MXU-operand width): loose tolerance.
    ybf = jax.block_until_ready(house_price_predictor(x, params))
    assert ybf.shape == (B, D_out), ybf.shape
    assert jnp.allclose(ybf, y_ref, atol=5e-2, rtol=5e-2), \
        f"bf16 max abs err = {jnp.max(jnp.abs(ybf - y_ref))}"

    # Larger batch with a forced small tile: exercises a multi-step grid with
    # a ragged (masked) last block and lane-dense tiled output, no padding.
    B2 = 384
    key, kx2 = jax.random.split(key)
    x2 = jax.random.normal(kx2, (B2, D_in), jnp.float32)
    y2 = jax.block_until_ready(house_price_predictor(x2, params, block_b=256))
    y2_ref = reference_forward(x2, params)
    assert y2.shape == (B2, D_out), y2.shape
    assert jnp.allclose(y2, y2_ref, atol=5e-2, rtol=5e-2), \
        f"tiled bf16 max abs err = {jnp.max(jnp.abs(y2 - y2_ref))}"

    print("KERNEL_OK")
</pallas_src>

<mosaic_0001>
module attributes {stable_mosaic.version = 11 : i64} {
  func.func @_mlp_kernel(%arg0: i32, %arg1: memref<8x32xf32, #tpu.memory_space<vmem>>, %arg2: memref<32x64xf32, #tpu.memory_space<vmem>>, %arg3: memref<64x1xf32, #tpu.memory_space<vmem>>, %arg4: memref<64x64xf32, #tpu.memory_space<vmem>>, %arg5: memref<64x1xf32, #tpu.memory_space<vmem>>, %arg6: memref<64x32xf32, #tpu.memory_space<vmem>>, %arg7: memref<32x1xf32, #tpu.memory_space<vmem>>, %arg8: memref<32x1xf32, #tpu.memory_space<vmem>>, %arg9: memref<1x1xf32, #tpu.memory_space<vmem>>, %arg10: memref<1x8xf32, #tpu.memory_space<vmem>>) attributes {dimension_semantics = [#tpu.dimension_semantics<parallel>], iteration_bounds = array<i64: 1>, scalar_prefetch = 0 : i64, scratch_operands = 0 : i64, tpu.core_type = #tpu.core_type<tc>, window_params = [{transform_indices = @transform_0, window_bounds = array<i64: 8, 32>}, {pipeline_mode = #tpu.pipeline_mode<synchronous>, transform_indices = @transform_1, window_bounds = array<i64: 32, 64>}, {pipeline_mode = #tpu.pipeline_mode<synchronous>, transform_indices = @transform_2, window_bounds = array<i64: 64, 1>}, {pipeline_mode = #tpu.pipeline_mode<synchronous>, transform_indices = @transform_3, window_bounds = array<i64: 64, 64>}, {pipeline_mode = #tpu.pipeline_mode<synchronous>, transform_indices = @transform_4, window_bounds = array<i64: 64, 1>}, {pipeline_mode = #tpu.pipeline_mode<synchronous>, transform_indices = @transform_5, window_bounds = array<i64: 64, 32>}, {pipeline_mode = #tpu.pipeline_mode<synchronous>, transform_indices = @transform_6, window_bounds = array<i64: 32, 1>}, {pipeline_mode = #tpu.pipeline_mode<synchronous>, transform_indices = @transform_7, window_bounds = array<i64: 32, 1>}, {pipeline_mode = #tpu.pipeline_mode<synchronous>, transform_indices = @transform_8, window_bounds = array<i64: 1, 1>}, {transform_indices = @transform_9, window_bounds = array<i64: 1, 8>}]} {
    %c0 = arith.constant 0 : index
    %c0_0 = arith.constant 0 : index
    %0 = vector.load %arg1[%c0, %c0_0] : memref<8x32xf32, #tpu.memory_space<vmem>>, vector<8x32xf32>
    %c0_1 = arith.constant 0 : index
    %c0_2 = arith.constant 0 : index
    %1 = vector.load %arg2[%c0_1, %c0_2] : memref<32x64xf32, #tpu.memory_space<vmem>>, vector<32x64xf32>
    %cst = arith.constant dense<0.000000e+00> : vector<64x8xf32>
    %2 = tpu.matmul %1, %0, %cst {dimension_numbers = #tpu.dot_dimension_numbers<[0], [1], [1], [0], [0, 1, 1, 0], [], []>} : vector<32x64xf32>, vector<8x32xf32>, vector<64x8xf32> -> vector<64x8xf32>
    %c0_3 = arith.constant 0 : index
    %c0_4 = arith.constant 0 : index
    %3 = vector.load %arg3[%c0_3, %c0_4] : memref<64x1xf32, #tpu.memory_space<vmem>>, vector<64x1xf32>
    %4 = vector.broadcast %3 : vector<64x1xf32> to vector<64x8xf32>
    %5 = arith.addf %2, %4 : vector<64x8xf32>
    %cst_5 = arith.constant 0.000000e+00 : f32
    %6 = vector.broadcast %cst_5 : f32 to vector<64x8xf32>
    %7 = arith.maximumf %5, %6 : vector<64x8xf32>
    %c0_6 = arith.constant 0 : index
    %c0_7 = arith.constant 0 : index
    %8 = vector.load %arg4[%c0_6, %c0_7] : memref<64x64xf32, #tpu.memory_space<vmem>>, vector<64x64xf32>
    %cst_8 = arith.constant dense<0.000000e+00> : vector<64x8xf32>
    %9 = tpu.matmul %8, %7, %cst_8 {dimension_numbers = #tpu.dot_dimension_numbers<[0], [0], [1], [1], [0, 1, 1, 1], [], []>} : vector<64x64xf32>, vector<64x8xf32>, vector<64x8xf32> -> vector<64x8xf32>
    %c0_9 = arith.constant 0 : index
    %c0_10 = arith.constant 0 : index
    %10 = vector.load %arg5[%c0_9, %c0_10] : memref<64x1xf32, #tpu.memory_space<vmem>>, vector<64x1xf32>
    %11 = vector.broadcast %10 : vector<64x1xf32> to vector<64x8xf32>
    %12 = arith.addf %9, %11 : vector<64x8xf32>
    %cst_11 = arith.constant 0.000000e+00 : f32
    %13 = vector.broadcast %cst_11 : f32 to vector<64x8xf32>
    %14 = arith.maximumf %12, %13 : vector<64x8xf32>
    %c0_12 = arith.constant 0 : index
    %c0_13 = arith.constant 0 : index
    %15 = vector.load %arg6[%c0_12, %c0_13] : memref<64x32xf32, #tpu.memory_space<vmem>>, vector<64x32xf32>
    %cst_14 = arith.constant dense<0.000000e+00> : vector<32x8xf32>
    %16 = tpu.matmul %15, %14, %cst_14 {dimension_numbers = #tpu.dot_dimension_numbers<[0], [0], [1], [1], [0, 1, 1, 1], [], []>} : vector<64x32xf32>, vector<64x8xf32>, vector<32x8xf32> -> vector<32x8xf32>
    %c0_15 = arith.constant 0 : index
    %c0_16 = arith.constant 0 : index
    %17 = vector.load %arg7[%c0_15, %c0_16] : memref<32x1xf32, #tpu.memory_space<vmem>>, vector<32x1xf32>
    %18 = vector.broadcast %17 : vector<32x1xf32> to vector<32x8xf32>
    %19 = arith.addf %16, %18 : vector<32x8xf32>
    %cst_17 = arith.constant 0.000000e+00 : f32
    %20 = vector.broadcast %cst_17 : f32 to vector<32x8xf32>
    %21 = arith.maximumf %19, %20 : vector<32x8xf32>
    %c0_18 = arith.constant 0 : index
    %c0_19 = arith.constant 0 : index
    %22 = vector.load %arg8[%c0_18, %c0_19] : memref<32x1xf32, #tpu.memory_space<vmem>>, vector<32x1xf32>
    %cst_20 = arith.constant dense<0.000000e+00> : vector<1x8xf32>
    %23 = tpu.matmul %22, %21, %cst_20 {dimension_numbers = #tpu.dot_dimension_numbers<[0], [0], [1], [1], [0, 1, 1, 1], [], []>} : vector<32x1xf32>, vector<32x8xf32>, vector<1x8xf32> -> vector<1x8xf32>
    %c0_21 = arith.constant 0 : index
    %c0_22 = arith.constant 0 : index
    %24 = vector.load %arg9[%c0_21, %c0_22] : memref<1x1xf32, #tpu.memory_space<vmem>>, vector<1x1xf32>
    %25 = vector.broadcast %24 : vector<1x1xf32> to vector<1x8xf32>
    %26 = arith.addf %23, %25 : vector<1x8xf32>
    %c0_23 = arith.constant 0 : index
    %c0_24 = arith.constant 0 : index
    %27 = vector.load %arg10[%c0_23, %c0_24] : memref<1x8xf32, #tpu.memory_space<vmem>>, vector<1x8xf32>
    tpu.vector_store %arg10[%c0_23, %c0_24], %26 {strides = array<i32>} : memref<1x8xf32, #tpu.memory_space<vmem>>, vector<1x8xf32>,
    return
  }
  func.func @transform_0(%arg0: i32) -> (i32, i32) {
    %c0_i32 = arith.constant 0 : i32
    %c0_i32_0 = arith.constant 0 : i32
    return %arg0, %c0_i32 : i32, i32
  }
  func.func @transform_1(%arg0: i32) -> (i32, i32) {
    %c0_i32 = arith.constant 0 : i32
    %c0_i32_0 = arith.constant 0 : i32
    %c0_i32_1 = arith.constant 0 : i32
    return %c0_i32, %c0_i32_0 : i32, i32
  }
  func.func @transform_2(%arg0: i32) -> (i32, i32) {
    %c0_i32 = arith.constant 0 : i32
    %c0_i32_0 = arith.constant 0 : i32
    %c0_i32_1 = arith.constant 0 : i32
    return %c0_i32, %c0_i32_0 : i32, i32
  }
  func.func @transform_3(%arg0: i32) -> (i32, i32) {
    %c0_i32 = arith.constant 0 : i32
    %c0_i32_0 = arith.constant 0 : i32
    %c0_i32_1 = arith.constant 0 : i32
    return %c0_i32, %c0_i32_0 : i32, i32
  }
  func.func @transform_4(%arg0: i32) -> (i32, i32) {
    %c0_i32 = arith.constant 0 : i32
    %c0_i32_0 = arith.constant 0 : i32
    %c0_i32_1 = arith.constant 0 : i32
    return %c0_i32, %c0_i32_0 : i32, i32
  }
  func.func @transform_5(%arg0: i32) -> (i32, i32) {
    %c0_i32 = arith.constant 0 : i32
    %c0_i32_0 = arith.constant 0 : i32
    %c0_i32_1 = arith.constant 0 : i32
    return %c0_i32, %c0_i32_0 : i32, i32
  }
  func.func @transform_6(%arg0: i32) -> (i32, i32) {
    %c0_i32 = arith.constant 0 : i32
    %c0_i32_0 = arith.constant 0 : i32
    %c0_i32_1 = arith.constant 0 : i32
    return %c0_i32, %c0_i32_0 : i32, i32
  }
  func.func @transform_7(%arg0: i32) -> (i32, i32) {
    %c0_i32 = arith.constant 0 : i32
    %c0_i32_0 = arith.constant 0 : i32
    %c0_i32_1 = arith.constant 0 : i32
    return %c0_i32, %c0_i32_0 : i32, i32
  }
  func.func @transform_8(%arg0: i32) -> (i32, i32) {
    %c0_i32 = arith.constant 0 : i32
    %c0_i32_0 = arith.constant 0 : i32
    %c0_i32_1 = arith.constant 0 : i32
    return %c0_i32, %c0_i32_0 : i32, i32
  }
  func.func @transform_9(%arg0: i32) -> (i32, i32) {
    %c0_i32 = arith.constant 0 : i32
    %c0_i32_0 = arith.constant 0 : i32
    return %c0_i32, %arg0 : i32, i32
  }
}

</mosaic_0001>

<llo_original>
// kernel: house_price_predictor.1
$region0: #{house_price_predictor.1}
  #allocation0 [shape = 'u32[]', space=smem, size = 0x4, offset = 0x4, fixed_abs, tag = 'smem constant byte address 0x4 - core index']
  #allocation1 [shape = 'u32[144,128]{1,0:T(1,128)}', space=vmem, size = 0x12000, scoped, tag = 'internal scratch']
  #allocation2 [shape = 'f32[1,1]{1,0:T(1,128)S(1)}', space=vmem, size = 0x200, scoped, tag = 'scoped memory for house_price_predictor.1']
  %s0 = inlined_call_operand.vmem [shape: f32[8,32], index: 0, kind: input, shape index: {}]
  %s1 = inlined_call_operand.vmem [shape: f32[32,64], index: 1, kind: input, shape index: {}]
  %s2 = inlined_call_operand.vmem [shape: f32[64,1], index: 2, kind: input, shape index: {}]
  %s3 = inlined_call_operand.vmem [shape: f32[64,64], index: 3, kind: input, shape index: {}]
  %s4 = inlined_call_operand.vmem [shape: f32[64,1], index: 4, kind: input, shape index: {}]
  %s5 = inlined_call_operand.vmem [shape: f32[64,32], index: 5, kind: input, shape index: {}]
  %s6 = inlined_call_operand.vmem [shape: f32[32,1], index: 6, kind: input, shape index: {}]
  %s7 = inlined_call_operand.vmem [shape: f32[32,1], index: 7, kind: input, shape index: {}]
  %s8 = inlined_call_operand.<no memory space> [shape: f32[1,1], index: 8, kind: input, shape index: {}]
  %s9 = inlined_call_operand.hbm [shape: f32[1,8], index: 9, kind: output, shape index: {}]
  %s10 = sld [smem:[#allocation0]]
  $region46: #{house_price_predictor.1} parent=0
    _
  %s12 = ssub.s32 1, %s10
  %s13 = scalar_select 0, %s12, %s10
  %v14 = vstv %s8
  %15 = vst [vmem:[#allocation2] sm:$0x1] %v14
  $region1: #{house_price_predictor.1} parent=0
    #allocation3 [shape = 'u8[512]{0}', space=vmem, size = 0x400, scoped, tag = 'output window, operand 0, single buffered']
    #allocation4 [shape = 's32[1]{0}', space=sflag, size = 0x4, scoped, tag = 'scoped memory for house_price_predictor.1']
    %16 = vsyncpa [#allocation4], 0
    // Predicated region
    $region2: #{house_price_predictor.1} parent=1 // pred_check
      _
    $region3: #{house_price_predictor.1} parent=1 // pred_check_branch
      %18 = sbr.rel (0) target = $region5
    $region4: #{house_price_predictor.1} parent=1 // pred_region
      _
    $region5: #{house_price_predictor.1} parent=1 // pred_fallthru
      _
    // Predicated region
    $region6: #{house_price_predictor.1} parent=1 // pred_check
      _
    $region7: #{house_price_predictor.1} parent=1 // pred_check_branch
      %20 = sbr.rel (0) target = $region9
    $region8: #{house_price_predictor.1} parent=1 // pred_region
      _
    $region9: #{house_price_predictor.1} parent=1 // pred_fallthru
      _
    // Predicated region
    $region10: #{house_price_predictor.1} parent=1 // pred_check
      _
    $region11: #{house_price_predictor.1} parent=1 // pred_check_branch
      %22 = sbr.rel (0) target = $region13
    $region12: #{house_price_predictor.1} parent=1 // pred_region
      _
    $region13: #{house_price_predictor.1} parent=1 // pred_fallthru
      _
    // Predicated region
    $region14: #{house_price_predictor.1} parent=1 // pred_check
      _
    $region15: #{house_price_predictor.1} parent=1 // pred_check_branch
      %24 = sbr.rel (0) target = $region17
    $region16: #{house_price_predictor.1} parent=1 // pred_region
      _
    $region17: #{house_price_predictor.1} parent=1 // pred_fallthru
      _
    // Predicated region
    $region18: #{house_price_predictor.1} parent=1 // pred_check
      _
    $region19: #{house_price_predictor.1} parent=1 // pred_check_branch
      %26 = sbr.rel (0) target = $region21
    $region20: #{house_price_predictor.1} parent=1 // pred_region
      _
    $region21: #{house_price_predictor.1} parent=1 // pred_fallthru
      _
    // Predicated region
    $region22: #{house_price_predictor.1} parent=1 // pred_check
      _
    $region23: #{house_price_predictor.1} parent=1 // pred_check_branch
      %28 = sbr.rel (0) target = $region25
    $region24: #{house_price_predictor.1} parent=1 // pred_region
      _
    $region25: #{house_price_predictor.1} parent=1 // pred_fallthru
      _
    // Predicated region
    $region26: #{house_price_predictor.1} parent=1 // pred_check
      _
    $region27: #{house_price_predictor.1} parent=1 // pred_check_branch
      %30 = sbr.rel (0) target = $region29
    $region28: #{house_price_predictor.1} parent=1 // pred_region
      _
    $region29: #{house_price_predictor.1} parent=1 // pred_fallthru
      _
    // Predicated region
    $region30: #{house_price_predictor.1} parent=1 // pred_check
      _
    $region31: #{house_price_predictor.1} parent=1 // pred_check_branch
      %32 = sbr.rel (0) target = $region33
    $region32: #{house_price_predictor.1} parent=1 // pred_region
      _
    $region33: #{house_price_predictor.1} parent=1 // pred_fallthru
      _
    // Predicated region
    $region34: #{house_price_predictor.1} parent=1 // pred_check
      _
    $region35: #{house_price_predictor.1} parent=1 // pred_check_branch
      %34 = sbr.rel (0) target = $region37
    $region36: #{house_price_predictor.1} parent=1 // pred_region
      _
    $region37: #{house_price_predictor.1} parent=1 // pred_fallthru
      _
    %v35 = vld [vmem:[%s0] sm:$0xff]
    %v36 = vld [vmem:[%s1] sm:$0xff]
    %v37 = vld [vmem:[%s1 + $0x8] sm:$0xff]
    %v38 = vld [vmem:[%s1 + $0x10] sm:$0xff]
    %v39 = vld [vmem:[%s1 + $0x18] sm:$0xff]
    %v40 = vld [vmem:[%s2] sm:$0xff]
    %v41 = vld [vmem:[%s2 + $0x8] sm:$0xff]
    %v42 = vld [vmem:[%s2 + $0x10] sm:$0xff]
    %v43 = vld [vmem:[%s2 + $0x18] sm:$0xff]
    %v44 = vld [vmem:[%s2 + $0x20] sm:$0xff]
    %v45 = vld [vmem:[%s2 + $0x28] sm:$0xff]
    %v46 = vld [vmem:[%s2 + $0x30] sm:$0xff]
    %v47 = vld [vmem:[%s2 + $0x38] sm:$0xff]
    %49 = vset.pattern.permute.xlu0 0
    %50 = vperm.xlu0 %49, %v40
    %v51 = vpop.permute.xlu0 %50
    %54 = vset.pattern.permute.xlu0 0
    %55 = vperm.xlu0 %54, %v41
    %v56 = vpop.permute.xlu0 %55
    %59 = vset.pattern.permute.xlu0 0
    %60 = vperm.xlu0 %59, %v42
    %v61 = vpop.permute.xlu0 %60
    %64 = vset.pattern.permute.xlu0 0
    %65 = vperm.xlu0 %64, %v43
    %v66 = vpop.permute.xlu0 %65
    %69 = vset.pattern.permute.xlu0 0
    %70 = vperm.xlu0 %69, %v44
    %v71 = vpop.permute.xlu0 %70
    %74 = vset.pattern.permute.xlu0 0
    %75 = vperm.xlu0 %74, %v45
    %v76 = vpop.permute.xlu0 %75
    %79 = vset.pattern.permute.xlu0 0
    %80 = vperm.xlu0 %79, %v46
    %v81 = vpop.permute.xlu0 %80
    %84 = vset.pattern.permute.xlu0 0
    %85 = vperm.xlu0 %84, %v47
    %v86 = vpop.permute.xlu0 %85
    %88 = vxpose.xlu0.b32.start [1/16] %v36, 128
    %89 = vxpose.xlu0.b32.cont [2/16] %v37, 128
    %90 = vxpose.xlu0.b32.cont [3/16] %v38, 128
    %91 = vxpose.xlu0.b32.cont [4/16] %v39, 128
    %92 = vxpose.xlu0.b32.cont [5/16] 0.0, 128
    %93 = vxpose.xlu0.b32.cont [6/16] 0.0, 128
    %94 = vxpose.xlu0.b32.cont [7/16] 0.0, 128
    %95 = vxpose.xlu0.b32.cont [8/16] 0.0, 128
    %96 = vxpose.xlu0.b32.cont [9/16] 0.0, 128
    %97 = vxpose.xlu0.b32.cont [10/16] 0.0, 128
    %98 = vxpose.xlu0.b32.cont [11/16] 0.0, 128
    %99 = vxpose.xlu0.b32.cont [12/16] 0.0, 128
    %100 = vxpose.xlu0.b32.cont [13/16] 0.0, 128
    %101 = vxpose.xlu0.b32.cont [14/16] 0.0, 128
    %102 = vxpose.xlu0.b32.cont [15/16] 0.0, 128
    %103 = vxpose.xlu0.b32.end [16/16] 0.0, 128
    %v104 = vpop.trf.xlu0
    %v105 = vpop.trf.xlu0
    %v106 = vpop.trf.xlu0
    %v107 = vpop.trf.xlu0
    %v108 = vpop.trf.xlu0
    %v109 = vpop.trf.xlu0
    %v110 = vpop.trf.xlu0
    %v111 = vpop.trf.xlu0
    %v112 = vpop.trf.xlu0
    %v113 = vpop.trf.xlu0
    %v114 = vpop.trf.xlu0
    %v115 = vpop.trf.xlu0
    %v116 = vpop.trf.xlu0
    %v117 = vpop.trf.xlu0
    %v118 = vpop.trf.xlu0
    %v119 = vpop.trf.xlu0
    %vm120 = vcmask 261120
    %v122 = vsel %vm120, %v104, 0
    %v125 = vsel %vm120, %v105, 0
    %v128 = vsel %vm120, %v106, 0
    %v131 = vsel %vm120, %v107, 0
    %v134 = vsel %vm120, %v108, 0
    %v137 = vsel %vm120, %v109, 0
    %v140 = vsel %vm120, %v110, 0
    %v143 = vsel %vm120, %v111, 0
    %v146 = vsel %vm120, %v35, 0
    %148 = vmatprep.subr.mxu0 0.0
    %149 = vmatpush1.xpose.msra.mxu0 0.0
    %150 = vmatprep.subr.mxu0 0.0
    %151 = vmatpush1.xpose.msra.mxu0 0.0
    %152 = vmatprep.subr.mxu0 0.0
    %153 = vmatpush1.xpose.msra.mxu0 0.0
    %154 = vmatprep.subr.mxu0 0.0
    %155 = vmatpush1.xpose.msra.mxu0 0.0
    %156 = vmatprep.subr.mxu0 0.0
    %157 = vmatpush1.xpose.msra.mxu0 0.0
    %158 = vmatprep.subr.mxu0 0.0
    %159 = vmatpush1.xpose.msra.mxu0 0.0
    %160 = vmatprep.subr.mxu0 0.0
    %161 = vmatpush1.xpose.msra.mxu0 0.0
    %162 = vmatprep.subr.mxu0 0.0
    %163 = vmatpush1.xpose.msra.mxu0 0.0
    %164 = vmatprep.subr.mxu0 0.0
    %165 = vmatpush1.xpose.msra.mxu0 0.0
    %166 = vmatprep.subr.mxu0 0.0
    %167 = vmatpush1.xpose.msra.mxu0 0.0
    %168 = vmatprep.subr.mxu0 0.0
    %169 = vmatpush1.xpose.msra.mxu0 0.0
    %170 = vmatprep.subr.mxu0 0.0
    %171 = vmatpush1.xpose.msra.mxu0 0.0
    %172 = vmatprep.subr.mxu0 0.0
    %173 = vmatpush1.xpose.msra.mxu0 0.0
    %174 = vmatprep.subr.mxu0 0.0
    %175 = vmatpush1.xpose.msra.mxu0 0.0
    %176 = vmatprep.subr.mxu0 0.0
    %177 = vmatpush1.xpose.msra.mxu0 0.0
    %178 = vmatprep.subr.mxu0 0.0
    %179 = vmatpush1.xpose.msra.mxu0 %v146
    %180 = vmatprep.subr.mxu0 0.0
    %181 = vmatpush2.xpose.msra.mxu0 0.0
    %182 = vmatprep.subr.mxu0 0.0
    %183 = vmatpush2.xpose.msra.mxu0 0.0
    %184 = vmatprep.subr.mxu0 0.0
    %185 = vmatpush2.xpose.msra.mxu0 0.0
    %186 = vmatprep.subr.mxu0 0.0
    %187 = vmatpush2.xpose.msra.mxu0 0.0
    %188 = vmatprep.subr.mxu0 0.0
    %189 = vmatpush2.xpose.msra.mxu0 0.0
    %190 = vmatprep.subr.mxu0 0.0
    %191 = vmatpush2.xpose.msra.mxu0 0.0
    %192 = vmatprep.subr.mxu0 0.0
    %193 = vmatpush2.xpose.msra.mxu0 0.0
    %194 = vmatprep.subr.mxu0 0.0
    %195 = vmatpush2.xpose.msra.mxu0 0.0
    %196 = vmatprep.subr.mxu0 0.0
    %197 = vmatpush2.xpose.msra.mxu0 0.0
    %198 = vmatprep.subr.mxu0 0.0
    %199 = vmatpush2.xpose.msra.mxu0 0.0
    %200 = vmatprep.subr.mxu0 0.0
    %201 = vmatpush2.xpose.msra.mxu0 0.0
    %202 = vmatprep.subr.mxu0 0.0
    %203 = vmatpush2.xpose.msra.mxu0 0.0
    %204 = vmatprep.subr.mxu0 0.0
    %205 = vmatpush2.xpose.msra.mxu0 0.0
    %206 = vmatprep.subr.mxu0 0.0
    %207 = vmatpush2.xpose.msra.mxu0 0.0
    %208 = vmatprep.subr.mxu0 0.0
    %209 = vmatpush2.xpose.msra.mxu0 0.0
    %210 = vmatprep.subr.mxu0 0.0
    %211 = vmatpush2.xpose.msra.mxu0 0.0
    %212 = vmatprep.mubr.f32.mxu0 0.0
    %213 = vmatmul.mubr.f32.gmra.mxu0 %v122
    %v214 = vpop.f32.mrf.mxu0
    %v215 = vadd.f32 %v51, %v214
    %v216 = vpop.f32.mrf.mxu0
    %217 = vmatprep.mubr.f32.mxu0 0.0
    %218 = vmatmul.mubr.f32.gmra.mxu0 %v125
    %v219 = vpop.f32.mrf.mxu0
    %v220 = vadd.f32 %v56, %v219
    %v221 = vpop.f32.mrf.mxu0
    %222 = vmatprep.mubr.f32.mxu0 0.0
    %223 = vmatmul.mubr.f32.gmra.mxu0 %v128
    %v224 = vpop.f32.mrf.mxu0
    %v225 = vadd.f32 %v61, %v224
    %v226 = vpop.f32.mrf.mxu0
    %227 = vmatprep.mubr.f32.mxu0 0.0
    %228 = vmatmul.mubr.f32.gmra.mxu0 %v131
    %v229 = vpop.f32.mrf.mxu0
    %v230 = vadd.f32 %v66, %v229
    %v231 = vpop.f32.mrf.mxu0
    %232 = vmatprep.mubr.f32.mxu0 0.0
    %233 = vmatmul.mubr.f32.gmra.mxu0 %v134
    %v234 = vpop.f32.mrf.mxu0
    %v235 = vadd.f32 %v71, %v234
    %v236 = vpop.f32.mrf.mxu0
    %237 = vmatprep.mubr.f32.mxu0 0.0
    %238 = vmatmul.mubr.f32.gmra.mxu0 %v137
    %v239 = vpop.f32.mrf.mxu0
    %v240 = vadd.f32 %v76, %v239
    %v241 = vpop.f32.mrf.mxu0
    %242 = vmatprep.mubr.f32.mxu0 0.0
    %243 = vmatmul.mubr.f32.gmra.mxu0 %v140
    %v244 = vpop.f32.mrf.mxu0
    %v245 = vadd.f32 %v81, %v244
    %v246 = vpop.f32.mrf.mxu0
    %247 = vmatprep.mubr.f32.mxu0 0.0
    %248 = vmatmul.mubr.f32.gmra.mxu0 %v143
    %v249 = vpop.f32.mrf.mxu0
    %v250 = vadd.f32 %v86, %v249
    %v251 = vpop.f32.mrf.mxu0
    %252 = vdwg.mxu0
    %v253 = vmax.f32 %v215, 0.0
    %v254 = vmax.f32 %v220, 0.0
    %v255 = vmax.f32 %v225, 0.0
    %v256 = vmax.f32 %v230, 0.0
    %v257 = vmax.f32 %v235, 0.0
    %v258 = vmax.f32 %v240, 0.0
    %v259 = vmax.f32 %v245, 0.0
    %v260 = vmax.f32 %v250, 0.0
    %v261 = vld [vmem:[%s3] sm:$0xff]
    %v262 = vld [vmem:[%s3 + $0x8] sm:$0xff]
    %v263 = vld [vmem:[%s3 + $0x10] sm:$0xff]
    %v264 = vld [vmem:[%s3 + $0x18] sm:$0xff]
    %v265 = vld [vmem:[%s3 + $0x20] sm:$0xff]
    %v266 = vld [vmem:[%s3 + $0x28] sm:$0xff]
    %v267 = vld [vmem:[%s3 + $0x30] sm:$0xff]
    %v268 = vld [vmem:[%s3 + $0x38] sm:$0xff]
    %v269 = vld [vmem:[%s4] sm:$0xff]
    %v270 = vld [vmem:[%s4 + $0x8] sm:$0xff]
    %v271 = vld [vmem:[%s4 + $0x10] sm:$0xff]
    %v272 = vld [vmem:[%s4 + $0x18] sm:$0xff]
    %v273 = vld [vmem:[%s4 + $0x20] sm:$0xff]
    %v274 = vld [vmem:[%s4 + $0x28] sm:$0xff]
    %v275 = vld [vmem:[%s4 + $0x30] sm:$0xff]
    %v276 = vld [vmem:[%s4 + $0x38] sm:$0xff]
    %278 = vset.pattern.permute.xlu0 0
    %279 = vperm.xlu0 %278, %v269
    %v280 = vpop.permute.xlu0 %279
    %283 = vset.pattern.permute.xlu0 0
    %284 = vperm.xlu0 %283, %v270
    %v285 = vpop.permute.xlu0 %284
    %288 = vset.pattern.permute.xlu0 0
    %289 = vperm.xlu0 %288, %v271
    %v290 = vpop.permute.xlu0 %289
    %293 = vset.pattern.permute.xlu0 0
    %294 = vperm.xlu0 %293, %v272
    %v295 = vpop.permute.xlu0 %294
    %298 = vset.pattern.permute.xlu0 0
    %299 = vperm.xlu0 %298, %v273
    %v300 = vpop.permute.xlu0 %299
    %303 = vset.pattern.permute.xlu0 0
    %304 = vperm.xlu0 %303, %v274
    %v305 = vpop.permute.xlu0 %304
    %308 = vset.pattern.permute.xlu0 0
    %309 = vperm.xlu0 %308, %v275
    %v310 = vpop.permute.xlu0 %309
    %313 = vset.pattern.permute.xlu0 0
    %314 = vperm.xlu0 %313, %v276
    %v315 = vpop.permute.xlu0 %314
    %317 = vxpose.xlu0.b32.start [1/16] %v261, 128
    %318 = vxpose.xlu0.b32.cont [2/16] %v262, 128
    %319 = vxpose.xlu0.b32.cont [3/16] %v263, 128
    %320 = vxpose.xlu0.b32.cont [4/16] %v264, 128
    %321 = vxpose.xlu0.b32.cont [5/16] %v265, 128
    %322 = vxpose.xlu0.b32.cont [6/16] %v266, 128
    %323 = vxpose.xlu0.b32.cont [7/16] %v267, 128
    %324 = vxpose.xlu0.b32.cont [8/16] %v268, 128
    %325 = vxpose.xlu0.b32.cont [9/16] 0.0, 128
    %326 = vxpose.xlu0.b32.cont [10/16] 0.0, 128
    %327 = vxpose.xlu0.b32.cont [11/16] 0.0, 128
    %328 = vxpose.xlu0.b32.cont [12/16] 0.0, 128
    %329 = vxpose.xlu0.b32.cont [13/16] 0.0, 128
    %330 = vxpose.xlu0.b32.cont [14/16] 0.0, 128
    %331 = vxpose.xlu0.b32.cont [15/16] 0.0, 128
    %332 = vxpose.xlu0.b32.end [16/16] 0.0, 128
    %v333 = vpop.trf.xlu0
    %v334 = vpop.trf.xlu0
    %v335 = vpop.trf.xlu0
    %v336 = vpop.trf.xlu0
    %v337 = vpop.trf.xlu0
    %v338 = vpop.trf.xlu0
    %v339 = vpop.trf.xlu0
    %v340 = vpop.trf.xlu0
    %v341 = vpop.trf.xlu0
    %v342 = vpop.trf.xlu0
    %v343 = vpop.trf.xlu0
    %v344 = vpop.trf.xlu0
    %v345 = vpop.trf.xlu0
    %v346 = vpop.trf.xlu0
    %v347 = vpop.trf.xlu0
    %v348 = vpop.trf.xlu0
    %vm349 = vcmask 523264
    %v351 = vsel %vm349, %v333, 0
    %v354 = vsel %vm349, %v334, 0
    %v357 = vsel %vm349, %v335, 0
    %v360 = vsel %vm349, %v336, 0
    %v363 = vsel %vm349, %v337, 0
    %v366 = vsel %vm349, %v338, 0
    %v369 = vsel %vm349, %v339, 0
    %v372 = vsel %vm349, %v340, 0
    %374 = vmatprep.subr.mxu0 0.0
    %375 = vmatpush1.msra.mxu0 0.0
    %376 = vmatprep.subr.mxu0 0.0
    %377 = vmatpush1.msra.mxu0 0.0
    %378 = vmatprep.subr.mxu0 0.0
    %379 = vmatpush1.msra.mxu0 0.0
    %380 = vmatprep.subr.mxu0 0.0
    %381 = vmatpush1.msra.mxu0 0.0
    %382 = vmatprep.subr.mxu0 0.0
    %383 = vmatpush1.msra.mxu0 0.0
    %384 = vmatprep.subr.mxu0 0.0
    %385 = vmatpush1.msra.mxu0 0.0
    %386 = vmatprep.subr.mxu0 0.0
    %387 = vmatpush1.msra.mxu0 0.0
    %388 = vmatprep.subr.mxu0 0.0
    %389 = vmatpush1.msra.mxu0 0.0
    %390 = vmatprep.subr.mxu0 0.0
    %391 = vmatpush1.msra.mxu0 %v260
    %392 = vmatprep.subr.mxu0 0.0
    %393 = vmatpush1.msra.mxu0 %v259
    %394 = vmatprep.subr.mxu0 0.0
    %395 = vmatpush1.msra.mxu0 %v258
    %396 = vmatprep.subr.mxu0 0.0
    %397 = vmatpush1.msra.mxu0 %v257
    %398 = vmatprep.subr.mxu0 0.0
    %399 = vmatpush1.msra.mxu0 %v256
    %400 = vmatprep.subr.mxu0 0.0
    %401 = vmatpush1.msra.mxu0 %v255
    %402 = vmatprep.subr.mxu0 0.0
    %403 = vmatpush1.msra.mxu0 %v254
    %404 = vmatprep.subr.mxu0 0.0
    %405 = vmatpush1.msra.mxu0 %v253
    %406 = vmatprep.subr.mxu0 0.0
    %407 = vmatpush2.msra.mxu0 0.0
    %408 = vmatprep.subr.mxu0 0.0
    %409 = vmatpush2.msra.mxu0 0.0
    %410 = vmatprep.subr.mxu0 0.0
    %411 = vmatpush2.msra.mxu0 0.0
    %412 = vmatprep.subr.mxu0 0.0
    %413 = vmatpush2.msra.mxu0 0.0
    %414 = vmatprep.subr.mxu0 0.0
    %415 = vmatpush2.msra.mxu0 0.0
    %416 = vmatprep.subr.mxu0 0.0
    %417 = vmatpush2.msra.mxu0 0.0
    %418 = vmatprep.subr.mxu0 0.0
    %419 = vmatpush2.msra.mxu0 0.0
    %420 = vmatprep.subr.mxu0 0.0
    %421 = vmatpush2.msra.mxu0 0.0
    %422 = vmatprep.subr.mxu0 0.0
    %423 = vmatpush2.msra.mxu0 0.0
    %424 = vmatprep.subr.mxu0 0.0
    %425 = vmatpush2.msra.mxu0 0.0
    %426 = vmatprep.subr.mxu0 0.0
    %427 = vmatpush2.msra.mxu0 0.0
    %428 = vmatprep.subr.mxu0 0.0
    %429 = vmatpush2.msra.mxu0 0.0
    %430 = vmatprep.subr.mxu0 0.0
    %431 = vmatpush2.msra.mxu0 0.0
    %432 = vmatprep.subr.mxu0 0.0
    %433 = vmatpush2.msra.mxu0 0.0
    %434 = vmatprep.subr.mxu0 0.0
    %435 = vmatpush2.msra.mxu0 0.0
    %436 = vmatprep.subr.mxu0 0.0
    %437 = vmatpush2.msra.mxu0 0.0
    %438 = vmatprep.mubr.f32.mxu0 0.0
    %439 = vmatmul.mubr.f32.gmra.mxu0 %v351
    %v440 = vpop.f32.mrf.mxu0
    %v441 = vadd.f32 %v280, %v440
    %v442 = vpop.f32.mrf.mxu0
    %443 = vmatprep.mubr.f32.mxu0 0.0
    %444 = vmatmul.mubr.f32.gmra.mxu0 %v354
    %v445 = vpop.f32.mrf.mxu0
    %v446 = vadd.f32 %v285, %v445
    %v447 = vpop.f32.mrf.mxu0
    %448 = vmatprep.mubr.f32.mxu0 0.0
    %449 = vmatmul.mubr.f32.gmra.mxu0 %v357
    %v450 = vpop.f32.mrf.mxu0
    %v451 = vadd.f32 %v290, %v450
    %v452 = vpop.f32.mrf.mxu0
    %453 = vmatprep.mubr.f32.mxu0 0.0
    %454 = vmatmul.mubr.f32.gmra.mxu0 %v360
    %v455 = vpop.f32.mrf.mxu0
    %v456 = vadd.f32 %v295, %v455
    %v457 = vpop.f32.mrf.mxu0
    %458 = vmatprep.mubr.f32.mxu0 0.0
    %459 = vmatmul.mubr.f32.gmra.mxu0 %v363
    %v460 = vpop.f32.mrf.mxu0
    %v461 = vadd.f32 %v300, %v460
    %v462 = vpop.f32.mrf.mxu0
    %463 = vmatprep.mubr.f32.mxu0 0.0
    %464 = vmatmul.mubr.f32.gmra.mxu0 %v366
    %v465 = vpop.f32.mrf.mxu0
    %v466 = vadd.f32 %v305, %v465
    %v467 = vpop.f32.mrf.mxu0
    %468 = vmatprep.mubr.f32.mxu0 0.0
    %469 = vmatmul.mubr.f32.gmra.mxu0 %v369
    %v470 = vpop.f32.mrf.mxu0
    %v471 = vadd.f32 %v310, %v470
    %v472 = vpop.f32.mrf.mxu0
    %473 = vmatprep.mubr.f32.mxu0 0.0
    %474 = vmatmul.mubr.f32.gmra.mxu0 %v372
    %v475 = vpop.f32.mrf.mxu0
    %v476 = vadd.f32 %v315, %v475
    %v477 = vpop.f32.mrf.mxu0
    %478 = vdwg.mxu0
    %v479 = vmax.f32 %v441, 0.0
    %v480 = vmax.f32 %v446, 0.0
    %v481 = vmax.f32 %v451, 0.0
    %v482 = vmax.f32 %v456, 0.0
    %v483 = vmax.f32 %v461, 0.0
    %v484 = vmax.f32 %v466, 0.0
    %v485 = vmax.f32 %v471, 0.0
    %v486 = vmax.f32 %v476, 0.0
    %v487 = vld [vmem:[%s5] sm:$0xff]
    %v488 = vld [vmem:[%s5 + $0x8] sm:$0xff]
    %v489 = vld [vmem:[%s5 + $0x10] sm:$0xff]
    %v490 = vld [vmem:[%s5 + $0x18] sm:$0xff]
    %v491 = vld [vmem:[%s5 + $0x20] sm:$0xff]
    %v492 = vld [vmem:[%s5 + $0x28] sm:$0xff]
    %v493 = vld [vmem:[%s5 + $0x30] sm:$0xff]
    %v494 = vld [vmem:[%s5 + $0x38] sm:$0xff]
    %v495 = vld [vmem:[%s6] sm:$0xff]
    %v496 = vld [vmem:[%s6 + $0x8] sm:$0xff]
    %v497 = vld [vmem:[%s6 + $0x10] sm:$0xff]
    %v498 = vld [vmem:[%s6 + $0x18] sm:$0xff]
    %500 = vset.pattern.permute.xlu0 0
    %501 = vperm.xlu0 %500, %v495
    %v502 = vpop.permute.xlu0 %501
    %505 = vset.pattern.permute.xlu0 0
    %506 = vperm.xlu0 %505, %v496
    %v507 = vpop.permute.xlu0 %506
    %510 = vset.pattern.permute.xlu0 0
    %511 = vperm.xlu0 %510, %v497
    %v512 = vpop.permute.xlu0 %511
    %515 = vset.pattern.permute.xlu0 0
    %516 = vperm.xlu0 %515, %v498
    %v517 = vpop.permute.xlu0 %516
    %519 = vxpose.xlu0.b32.start [1/16] %v487, 128
    %520 = vxpose.xlu0.b32.cont [2/16] %v488, 128
    %521 = vxpose.xlu0.b32.cont [3/16] %v489, 128
    %522 = vxpose.xlu0.b32.cont [4/16] %v490, 128
    %523 = vxpose.xlu0.b32.cont [5/16] %v491, 128
    %524 = vxpose.xlu0.b32.cont [6/16] %v492, 128
    %525 = vxpose.xlu0.b32.cont [7/16] %v493, 128
    %526 = vxpose.xlu0.b32.cont [8/16] %v494, 128
    %527 = vxpose.xlu0.b32.cont [9/16] 0.0, 128
    %528 = vxpose.xlu0.b32.cont [10/16] 0.0, 128
    %529 = vxpose.xlu0.b32.cont [11/16] 0.0, 128
    %530 = vxpose.xlu0.b32.cont [12/16] 0.0, 128
    %531 = vxpose.xlu0.b32.cont [13/16] 0.0, 128
    %532 = vxpose.xlu0.b32.cont [14/16] 0.0, 128
    %533 = vxpose.xlu0.b32.cont [15/16] 0.0, 128
    %534 = vxpose.xlu0.b32.end [16/16] 0.0, 128
    %v535 = vpop.trf.xlu0
    %v536 = vpop.trf.xlu0
    %v537 = vpop.trf.xlu0
    %v538 = vpop.trf.xlu0
    %v539 = vpop.trf.xlu0
    %v540 = vpop.trf.xlu0
    %v541 = vpop.trf.xlu0
    %v542 = vpop.trf.xlu0
    %v543 = vpop.trf.xlu0
    %v544 = vpop.trf.xlu0
    %v545 = vpop.trf.xlu0
    %v546 = vpop.trf.xlu0
    %v547 = vpop.trf.xlu0
    %v548 = vpop.trf.xlu0
    %v549 = vpop.trf.xlu0
    %v550 = vpop.trf.xlu0
    %v552 = vsel %vm349, %v535, 0
    %v555 = vsel %vm349, %v536, 0
    %v558 = vsel %vm349, %v537, 0
    %v561 = vsel %vm349, %v538, 0
    %563 = vmatprep.subr.mxu0 0.0
    %564 = vmatpush1.msra.mxu0 0.0
    %565 = vmatprep.subr.mxu0 0.0
    %566 = vmatpush1.msra.mxu0 0.0
    %567 = vmatprep.subr.mxu0 0.0
    %568 = vmatpush1.msra.mxu0 0.0
    %569 = vmatprep.subr.mxu0 0.0
    %570 = vmatpush1.msra.mxu0 0.0
    %571 = vmatprep.subr.mxu0 0.0
    %572 = vmatpush1.msra.mxu0 0.0
    %573 = vmatprep.subr.mxu0 0.0
    %574 = vmatpush1.msra.mxu0 0.0
    %575 = vmatprep.subr.mxu0 0.0
    %576 = vmatpush1.msra.mxu0 0.0
    %577 = vmatprep.subr.mxu0 0.0
    %578 = vmatpush1.msra.mxu0 0.0
    %579 = vmatprep.subr.mxu0 0.0
    %580 = vmatpush1.msra.mxu0 %v486
    %581 = vmatprep.subr.mxu0 0.0
    %582 = vmatpush1.msra.mxu0 %v485
    %583 = vmatprep.subr.mxu0 0.0
    %584 = vmatpush1.msra.mxu0 %v484
    %585 = vmatprep.subr.mxu0 0.0
    %586 = vmatpush1.msra.mxu0 %v483
    %587 = vmatprep.subr.mxu0 0.0
    %588 = vmatpush1.msra.mxu0 %v482
    %589 = vmatprep.subr.mxu0 0.0
    %590 = vmatpush1.msra.mxu0 %v481
    %591 = vmatprep.subr.mxu0 0.0
    %592 = vmatpush1.msra.mxu0 %v480
    %593 = vmatprep.subr.mxu0 0.0
    %594 = vmatpush1.msra.mxu0 %v479
    %595 = vmatprep.subr.mxu0 0.0
    %596 = vmatpush2.msra.mxu0 0.0
    %597 = vmatprep.subr.mxu0 0.0
    %598 = vmatpush2.msra.mxu0 0.0
    %599 = vmatprep.subr.mxu0 0.0
    %600 = vmatpush2.msra.mxu0 0.0
    %601 = vmatprep.subr.mxu0 0.0
    %602 = vmatpush2.msra.mxu0 0.0
    %603 = vmatprep.subr.mxu0 0.0
    %604 = vmatpush2.msra.mxu0 0.0
    %605 = vmatprep.subr.mxu0 0.0
    %606 = vmatpush2.msra.mxu0 0.0
    %607 = vmatprep.subr.mxu0 0.0
    %608 = vmatpush2.msra.mxu0 0.0
    %609 = vmatprep.subr.mxu0 0.0
    %610 = vmatpush2.msra.mxu0 0.0
    %611 = vmatprep.subr.mxu0 0.0
    %612 = vmatpush2.msra.mxu0 0.0
    %613 = vmatprep.subr.mxu0 0.0
    %614 = vmatpush2.msra.mxu0 0.0
    %615 = vmatprep.subr.mxu0 0.0
    %616 = vmatpush2.msra.mxu0 0.0
    %617 = vmatprep.subr.mxu0 0.0
    %618 = vmatpush2.msra.mxu0 0.0
    %619 = vmatprep.subr.mxu0 0.0
    %620 = vmatpush2.msra.mxu0 0.0
    %621 = vmatprep.subr.mxu0 0.0
    %622 = vmatpush2.msra.mxu0 0.0
    %623 = vmatprep.subr.mxu0 0.0
    %624 = vmatpush2.msra.mxu0 0.0
    %625 = vmatprep.subr.mxu0 0.0
    %626 = vmatpush2.msra.mxu0 0.0
    %627 = vmatprep.mubr.f32.mxu0 0.0
    %628 = vmatmul.mubr.f32.gmra.mxu0 %v552
    %v629 = vpop.f32.mrf.mxu0
    %v630 = vadd.f32 %v502, %v629
    %v631 = vpop.f32.mrf.mxu0
    %632 = vmatprep.mubr.f32.mxu0 0.0
    %633 = vmatmul.mubr.f32.gmra.mxu0 %v555
    %v634 = vpop.f32.mrf.mxu0
    %v635 = vadd.f32 %v507, %v634
    %v636 = vpop.f32.mrf.mxu0
    %637 = vmatprep.mubr.f32.mxu0 0.0
    %638 = vmatmul.mubr.f32.gmra.mxu0 %v558
    %v639 = vpop.f32.mrf.mxu0
    %v640 = vadd.f32 %v512, %v639
    %v641 = vpop.f32.mrf.mxu0
    %642 = vmatprep.mubr.f32.mxu0 0.0
    %643 = vmatmul.mubr.f32.gmra.mxu0 %v561
    %v644 = vpop.f32.mrf.mxu0
    %v645 = vadd.f32 %v517, %v644
    %v646 = vpop.f32.mrf.mxu0
    %647 = vdwg.mxu0
    %v648 = vmax.f32 %v630, 0.0
    %v649 = vmax.f32 %v635, 0.0
    %v650 = vmax.f32 %v640, 0.0
    %v651 = vmax.f32 %v645, 0.0
    %v652 = vld [vmem:[%s7] sm:$0xff]
    %v653 = vld [vmem:[%s7 + $0x8] sm:$0xff]
    %v654 = vld [vmem:[%s7 + $0x10] sm:$0xff]
    %v655 = vld [vmem:[%s7 + $0x18] sm:$0xff]
    %v656 = vld [vmem:[#allocation2] sm:$0x1]
    %658 = vset.pattern.permute.xlu0 0
    %659 = vperm.xlu0 %658, %v656
    %v660 = vpop.permute.xlu0 %659
    %v662 = vlaneseq
    %v663 = vshrl.u32 %v662, 7
    %v664 = vsub.s32 0, %v663
    %v665 = vrot.slane %v660, %v664
    %666 = vxpose.xlu0.b32.start [1/16] %v652, 128
    %667 = vxpose.xlu0.b32.cont [2/16] %v653, 128
    %668 = vxpose.xlu0.b32.cont [3/16] %v654, 128
    %669 = vxpose.xlu0.b32.cont [4/16] %v655, 128
    %670 = vxpose.xlu0.b32.cont [5/16] 0.0, 128
    %671 = vxpose.xlu0.b32.cont [6/16] 0.0, 128
    %672 = vxpose.xlu0.b32.cont [7/16] 0.0, 128
    %673 = vxpose.xlu0.b32.cont [8/16] 0.0, 128
    %674 = vxpose.xlu0.b32.cont [9/16] 0.0, 128
    %675 = vxpose.xlu0.b32.cont [10/16] 0.0, 128
    %676 = vxpose.xlu0.b32.cont [11/16] 0.0, 128
    %677 = vxpose.xlu0.b32.cont [12/16] 0.0, 128
    %678 = vxpose.xlu0.b32.cont [13/16] 0.0, 128
    %679 = vxpose.xlu0.b32.cont [14/16] 0.0, 128
    %680 = vxpose.xlu0.b32.cont [15/16] 0.0, 128
    %681 = vxpose.xlu0.b32.end [16/16] 0.0, 128
    %v682 = vpop.trf.xlu0
    %v683 = vpop.trf.xlu0
    %v684 = vpop.trf.xlu0
    %v685 = vpop.trf.xlu0
    %v686 = vpop.trf.xlu0
    %v687 = vpop.trf.xlu0
    %v688 = vpop.trf.xlu0
    %v689 = vpop.trf.xlu0
    %v690 = vpop.trf.xlu0
    %v691 = vpop.trf.xlu0
    %v692 = vpop.trf.xlu0
    %v693 = vpop.trf.xlu0
    %v694 = vpop.trf.xlu0
    %v695 = vpop.trf.xlu0
    %v696 = vpop.trf.xlu0
    %v697 = vpop.trf.xlu0
    %v699 = vsel %vm120, %v682, 0
    %701 = vmatprep.subr.mxu0 0.0
    %702 = vmatpush1.msra.mxu0 0.0
    %703 = vmatprep.subr.mxu0 0.0
    %704 = vmatpush1.msra.mxu0 0.0
    %705 = vmatprep.subr.mxu0 0.0
    %706 = vmatpush1.msra.mxu0 0.0
    %707 = vmatprep.subr.mxu0 0.0
    %708 = vmatpush1.msra.mxu0 0.0
    %709 = vmatprep.subr.mxu0 0.0
    %710 = vmatpush1.msra.mxu0 0.0
    %711 = vmatprep.subr.mxu0 0.0
    %712 = vmatpush1.msra.mxu0 0.0
    %713 = vmatprep.subr.mxu0 0.0
    %714 = vmatpush1.msra.mxu0 0.0
    %715 = vmatprep.subr.mxu0 0.0
    %716 = vmatpush1.msra.mxu0 0.0
    %717 = vmatprep.subr.mxu0 0.0
    %718 = vmatpush1.msra.mxu0 0.0
    %719 = vmatprep.subr.mxu0 0.0
    %720 = vmatpush1.msra.mxu0 0.0
    %721 = vmatprep.subr.mxu0 0.0
    %722 = vmatpush1.msra.mxu0 0.0
    %723 = vmatprep.subr.mxu0 0.0
    %724 = vmatpush1.msra.mxu0 0.0
    %725 = vmatprep.subr.mxu0 0.0
    %726 = vmatpush1.msra.mxu0 %v651
    %727 = vmatprep.subr.mxu0 0.0
    %728 = vmatpush1.msra.mxu0 %v650
    %729 = vmatprep.subr.mxu0 0.0
    %730 = vmatpush1.msra.mxu0 %v649
    %731 = vmatprep.subr.mxu0 0.0
    %732 = vmatpush1.msra.mxu0 %v648
    %733 = vmatprep.subr.mxu0 0.0
    %734 = vmatpush2.msra.mxu0 0.0
    %735 = vmatprep.subr.mxu0 0.0
    %736 = vmatpush2.msra.mxu0 0.0
    %737 = vmatprep.subr.mxu0 0.0
    %738 = vmatpush2.msra.mxu0 0.0
    %739 = vmatprep.subr.mxu0 0.0
    %740 = vmatpush2.msra.mxu0 0.0
    %741 = vmatprep.subr.mxu0 0.0
    %742 = vmatpush2.msra.mxu0 0.0
    %743 = vmatprep.subr.mxu0 0.0
    %744 = vmatpush2.msra.mxu0 0.0
    %745 = vmatprep.subr.mxu0 0.0
    %746 = vmatpush2.msra.mxu0 0.0
    %747 = vmatprep.subr.mxu0 0.0
    %748 = vmatpush2.msra.mxu0 0.0
    %749 = vmatprep.subr.mxu0 0.0
    %750 = vmatpush2.msra.mxu0 0.0
    %751 = vmatprep.subr.mxu0 0.0
    %752 = vmatpush2.msra.mxu0 0.0
    %753 = vmatprep.subr.mxu0 0.0
    %754 = vmatpush2.msra.mxu0 0.0
    %755 = vmatprep.subr.mxu0 0.0
    %756 = vmatpush2.msra.mxu0 0.0
    %757 = vmatprep.subr.mxu0 0.0
    %758 = vmatpush2.msra.mxu0 0.0
    %759 = vmatprep.subr.mxu0 0.0
    %760 = vmatpush2.msra.mxu0 0.0
    %761 = vmatprep.subr.mxu0 0.0
    %762 = vmatpush2.msra.mxu0 0.0
    %763 = vmatprep.subr.mxu0 0.0
    %764 = vmatpush2.msra.mxu0 0.0
    %765 = vmatprep.mubr.f32.mxu0 0.0
    %766 = vmatmul.mubr.f32.gmra.mxu0 %v699
    %v767 = vpop.f32.mrf.mxu0
    %v768 = vadd.f32 %v665, %v767
    %v769 = vpop.f32.mrf.mxu0
    %770 = vdwg.mxu0
    %vm771 = vcmask 57344
    %772 = vst.msk [vmem:[#allocation3] sm:$0x1] %vm771, %v768
    // Predicated region
    $region38: #{house_price_predictor.1} parent=1 // pred_check
      _
    $region39: #{house_price_predictor.1} parent=1 // pred_check_branch
      %774 = sbr.rel (0) target = $region41
    $region40: #{house_price_predictor.1} parent=1 // pred_region
      %s776 = ssub.s32 16, 16
      %777 = vsyncadd [#allocation4], %s776
      %s779 = sshll.u32 [#allocation3], 4
      %s780 = int_to_ptr.vmem [resolvable:$true] %s779
      %782 = dma.vmem_to_hbm [thread:$0]  %s780, 16, %s9, [#allocation4]
    $region41: #{house_price_predictor.1} parent=1 // pred_fallthru
      _
    // Predicated region
    $region42: #{house_price_predictor.1} parent=1 // pred_check
      _
    $region43: #{house_price_predictor.1} parent=1 // pred_check_branch
      %784 = sbr.rel (0) target = $region45
    $region44: #{house_price_predictor.1} parent=1 // pred_region
      %785 = dma.done [#allocation4], 16
    $region45: #{house_price_predictor.1} parent=1 // pred_fallthru
      _
    %786 = vsyncpa [#allocation4], 1

</llo_original>
